<compile_context>
chip_gen: v6e
topology: v6e:2x2x1
jax: 0.10.0
libtpu: 0.0.40
codegen_flags: <defaults>
</compile_context>

<pallas_src>
import jax
import jax.numpy as jnp
from jax.experimental import pallas as pl
from jax.experimental.pallas import tpu as pltpu

# Above this contraction depth fall back to the MXU (per review: K <= ~32-64 is
# push/drain dominated on the 256-deep v6e/v7x MXU -> stay on the VPU).
_VPU_K_MAX = 32
# Lane-axis budget per grid step (elements).  HW=256 -> up to 16 images fused
# per step; keeps per-step vector intermediates at ~100-200 KiB of VMEM.
_LANE_TARGET = 4096


def _tree_sum(terms):
    """Balanced-tree sum of a list of arrays (exposes VALU ILP vs a serial chain)."""
    terms = list(terms)
    while len(terms) > 1:
        nxt = [terms[i] + terms[i + 1] for i in range(0, len(terms) - 1, 2)]
        if len(terms) % 2:
            nxt.append(terms[-1])
        terms = nxt
    return terms[0]


def _small_matmul(w, v):
    """(M, K) x (K, LW) -> (M, LW) in f32.

    Tiny K stays on the VPU as unrolled broadcast-FMAs summed in a balanced
    tree; larger K goes to the MXU."""
    _, K = w.shape
    if K <= _VPU_K_MAX:
        return _tree_sum([v[c:c + 1, :] * w[:, c:c + 1] for c in range(K)])
    return jnp.dot(w, v, preferred_element_type=jnp.float32)


def _make_kernel(W, LW, dilation, use_res, has_expand):
    d = dilation

    def depthwise(h, wd, m):
        # 3x3 depthwise = 9 static lane rotations (XLU slot, overlaps VALU) with
        # precomputed {0,1} boundary masks.  Three independent row partials
        # expose add ILP instead of one 9-deep serial chain; the center tap is
        # the only unmasked term.
        rows = []
        for ky in range(3):
            dy = (ky - 1) * d
            row = None
            for kx in range(3):
                dx = (kx - 1) * d
                t = ky * 3 + kx
                shift = (-(dy * W + dx)) % LW
                src = pltpu.roll(h, shift, 1) if shift else h
                term = src * wd[:, t:t + 1]
                if not (dy == 0 and dx == 0):
                    term = term * m[t:t + 1, :]
                row = term if row is None else row + term
            rows.append(row)
        return (rows[0] + rows[2]) + rows[1]

    if has_expand:
        def kernel(x_ref, m_ref, w1_ref, b1_ref, wd_ref, b2_ref, w3_ref, b3_ref,
                   o_ref):
            x = x_ref[0].astype(jnp.float32)                    # (Cin, LW)
            m = m_ref[...]                                      # (9, LW)
            # 1x1 expand conv (BN folded into w1) + bias + ReLU6
            h = _small_matmul(w1_ref[...], x) + b1_ref[...]     # (hid, LW)
            h = jnp.clip(h, 0.0, 6.0)
            # 3x3 depthwise conv (BN folded into wd) + bias + ReLU6
            acc = depthwise(h, wd_ref[...], m)
            acc = jnp.clip(acc + b2_ref[...], 0.0, 6.0)
            # 1x1 project conv (BN folded into w3) + bias
            out = _small_matmul(w3_ref[...], acc) + b3_ref[...]  # (Cout, LW)
            if use_res:                                          # stride==1, Cin==Cout
                out = out + x
            o_ref[0] = out.astype(o_ref.dtype)
    else:
        # expanse_ratio == 1 variant: no 1x1 expand conv / first ReLU6.
        def kernel(x_ref, m_ref, wd_ref, b2_ref, w3_ref, b3_ref, o_ref):
            x = x_ref[0].astype(jnp.float32)                    # (hid, LW)
            m = m_ref[...]
            acc = depthwise(x, wd_ref[...], m)
            acc = jnp.clip(acc + b2_ref[...], 0.0, 6.0)
            out = _small_matmul(w3_ref[...], acc) + b3_ref[...]
            if use_res:
                out = out + x
            o_ref[0] = out.astype(o_ref.dtype)

    return kernel


def _const_spec(a):
    zeros = (0,) * a.ndim
    return pl.BlockSpec(a.shape, lambda g, _z=zeros: _z)


def _boundary_masks(H, W, dilation):
    """(9, H*W) f32 {0,1}: tap t = ky*3+kx is valid where the (dilated) 3x3 tap
    stays inside the image.  Precomputed once in the wrapper (hoists iota /
    div / mod / compares off the kernel's VALU slot)."""
    d = dilation
    pos = jnp.arange(H * W, dtype=jnp.int32)
    y = pos // W
    x = pos % W
    rows = []
    for ky in range(3):
        dy = (ky - 1) * d
        for kx in range(3):
            dx = (kx - 1) * d
            ok = jnp.ones((H * W,), dtype=bool)
            if dy < 0:
                ok = ok & (y >= d)
            elif dy > 0:
                ok = ok & (y < H - d)
            if dx < 0:
                ok = ok & (x >= d)
            elif dx > 0:
                ok = ok & (x < W - d)
            rows.append(ok)
    return jnp.stack(rows).astype(jnp.float32)


def mobilev2_residual_block(x_nchw, params, *, stride, dilation=1):
    """Public wrapper.  x_nchw: (N, C, H, W) like PyTorch; returns NCHW."""
    N, Cin, H, W = x_nchw.shape
    HW = H * W
    has_expand = "w1" in params
    hid = params["wd"].shape[-1]
    Cout = params["w3"].shape[1]
    use_res = (stride == 1) and (Cin == Cout)

    # ---- fold BN scales into the conv weights (inference-mode BN) ----------
    wds = params["wd"] * params["s2"][None, None, :]              # (3, 3, hid)
    wds = jnp.transpose(wds, (2, 0, 1)).reshape(hid, 9)           # (hid, 9)
    b2 = params["b2"].reshape(hid, 1)
    w3s = (params["w3"] * params["s3"][None, :]).T                # (Cout, hid)
    b3 = params["b3"].reshape(Cout, 1)
    if has_expand:
        w1s = (params["w1"] * params["s1"][None, :]).T            # (hid, Cin)
        b1 = params["b1"].reshape(hid, 1)

    # ---- fold the batch into the lane axis ----------------------------------
    # NB images per grid step: amortizes grid-step overhead, makes the I/O DMAs
    # big enough to pipeline, and keeps the output lane axis a multiple of 128.
    NB = max(1, min(N, _LANE_TARGET // HW)) if HW <= _LANE_TARGET else 1
    G = -(-N // NB)                      # ceil
    Np = G * NB
    LW = NB * HW
    x_flat = x_nchw.reshape(N, Cin, HW)
    if Np != N:
        x_flat = jnp.concatenate(
            [x_flat, jnp.zeros((Np - N, Cin, HW), x_flat.dtype)], axis=0)
    x_grp = x_flat.reshape(G, NB, Cin, HW).transpose(0, 2, 1, 3).reshape(G, Cin, LW)

    # Masks are periodic per image -> tile to the fused lane width.  They also
    # zero every roll that would wrap across an image boundary.
    masks = jnp.tile(_boundary_masks(H, W, dilation), (1, NB))    # (9, LW)

    kernel = _make_kernel(W, LW, dilation, use_res, has_expand)

    if has_expand:
        args = (x_grp, masks, w1s, b1, wds, b2, w3s, b3)
    else:
        args = (x_grp, masks, wds, b2, w3s, b3)

    in_specs = [pl.BlockSpec((1, Cin, LW), lambda g: (g, 0, 0))]
    in_specs += [_const_spec(a) for a in args[1:]]

    y_grp = pl.pallas_call(
        kernel,
        out_shape=jax.ShapeDtypeStruct((G, Cout, LW), x_nchw.dtype),
        grid_spec=pltpu.PrefetchScalarGridSpec(
            num_scalar_prefetch=0,
            grid=(G,),
            in_specs=in_specs,
            out_specs=pl.BlockSpec((1, Cout, LW), lambda g: (g, 0, 0)),
        ),
        # With G >= 2 (large batch) v7x's two TensorCores each take batch
        # groups; at tiny N the fully fused single step removes all per-image
        # grid/DMA overhead on single-TC v5e/v6e.
        compiler_params=pltpu.CompilerParams(
            dimension_semantics=("parallel",)),
    )(*args)

    y = (y_grp.reshape(G, Cout, NB, HW).transpose(0, 2, 1, 3)
         .reshape(Np, Cout, H, W))[:N]
    if stride != 1:
        # TODO(synk): depthwise/project are computed at stride-1 resolution and
        # subsampled here (keeps the kernel output lane-dense and avoids the
        # fragile in-kernel strided relayout); ~4x extra pointwise work.
        y = y[:, :, ::stride, ::stride]
    return y


def init_params(key, in_ch, out_ch, expanse_ratio):
    """Deterministic synthetic params; BN folded to (scale, shift), eps=1e-5."""
    hid = int(in_ch * expanse_ratio)
    ks = jax.random.split(key, 15)

    def bn_fold(kg, kb, km, kv, c):
        gamma = jax.random.uniform(kg, (c,), jnp.float32, 0.5, 1.5)
        beta = jax.random.uniform(kb, (c,), jnp.float32, -0.1, 0.1)
        mean = jax.random.uniform(km, (c,), jnp.float32, -0.1, 0.1)
        var = jax.random.uniform(kv, (c,), jnp.float32, 0.5, 1.5)
        scale = gamma / jnp.sqrt(var + 1e-5)
        shift = beta - mean * scale
        return scale, shift

    p = {}
    p["wd"] = jax.random.normal(ks[1], (3, 3, hid), jnp.float32) * 0.3
    p["w3"] = jax.random.normal(ks[2], (hid, out_ch), jnp.float32) * 0.3
    p["s2"], p["b2"] = bn_fold(ks[7], ks[8], ks[9], ks[10], hid)
    p["s3"], p["b3"] = bn_fold(ks[11], ks[12], ks[13], ks[14], out_ch)
    if expanse_ratio != 1:
        p["w1"] = jax.random.normal(ks[0], (in_ch, hid), jnp.float32) * 0.3
        p["s1"], p["b1"] = bn_fold(ks[3], ks[4], ks[5], ks[6], hid)
    return p


def reference_nhwc(x, p, *, stride, dilation, use_res):
    """Pure-JAX reference of the same forward pass (NHWC)."""
    pad = dilation
    if "w1" in p:
        h = jnp.einsum("nhwc,cd->nhwd", x, p["w1"])
        h = jnp.clip(h * p["s1"] + p["b1"], 0.0, 6.0)
    else:
        h = x
    dw = jax.lax.conv_general_dilated(
        h, p["wd"].reshape(3, 3, 1, -1),
        window_strides=(stride, stride),
        padding=[(pad, pad), (pad, pad)],
        rhs_dilation=(dilation, dilation),
        dimension_numbers=("NHWC", "HWIO", "NHWC"),
        feature_group_count=h.shape[-1])
    dw = jnp.clip(dw * p["s2"] + p["b2"], 0.0, 6.0)
    out = jnp.einsum("nhwc,cd->nhwd", dw, p["w3"])
    out = out * p["s3"] + p["b3"]
    if use_res:
        out = out + x
    return out


if __name__ == "__main__":
    key = jax.random.PRNGKey(0)

    def check(cfg_key, N, Cin, H, W, out_ch, stride, ratio, dilation):
        k_x, k_p = jax.random.split(cfg_key)
        x = jax.random.normal(k_x, (N, Cin, H, W), jnp.float32)
        p = init_params(k_p, Cin, out_ch, ratio)
        use_res = (stride == 1) and (Cin == out_ch)

        y = mobilev2_residual_block(x, p, stride=stride, dilation=dilation)
        y = jax.block_until_ready(y)

        ref = reference_nhwc(jnp.transpose(x, (0, 2, 3, 1)), p, stride=stride,
                             dilation=dilation, use_res=use_res)
        ref = jnp.transpose(ref, (0, 3, 1, 2))
        assert y.shape == ref.shape, (y.shape, ref.shape)
        err = float(jnp.max(jnp.abs(y - ref)))
        assert jnp.allclose(y, ref, atol=2e-3, rtol=2e-3), err

    k1, k2, k3 = jax.random.split(key, 3)
    # Spec config: MobileV2ResidualBlock(in=4, out=4, stride=1, expanse_ratio=2)
    check(k1, N=2, Cin=4, H=16, W=16, out_ch=4, stride=1, ratio=2, dilation=1)
    # stride=2 downsample variant (no residual), wrapper-side subsample.
    check(k2, N=2, Cin=4, H=16, W=16, out_ch=8, stride=2, ratio=2, dilation=1)
    # expanse_ratio=1 variant (no expand conv) with dilation=2.
    check(k3, N=2, Cin=4, H=16, W=16, out_ch=4, stride=1, ratio=1, dilation=2)

    print("KERNEL_OK")
</pallas_src>

<mosaic_0001>
module attributes {stable_mosaic.version = 11 : i64} {
  func.func @kernel(%arg0: i32, %arg1: memref<1x4x512xf32, #tpu.memory_space<vmem>>, %arg2: memref<9x512xf32, #tpu.memory_space<vmem>>, %arg3: memref<8x4xf32, #tpu.memory_space<vmem>>, %arg4: memref<8x1xf32, #tpu.memory_space<vmem>>, %arg5: memref<8x9xf32, #tpu.memory_space<vmem>>, %arg6: memref<8x1xf32, #tpu.memory_space<vmem>>, %arg7: memref<4x8xf32, #tpu.memory_space<vmem>>, %arg8: memref<4x1xf32, #tpu.memory_space<vmem>>, %arg9: memref<1x4x512xf32, #tpu.memory_space<vmem>>) attributes {dimension_semantics = [#tpu.dimension_semantics<parallel>], iteration_bounds = array<i64: 1>, scalar_prefetch = 0 : i64, scratch_operands = 0 : i64, tpu.core_type = #tpu.core_type<tc>, window_params = [{transform_indices = @transform_0, window_bounds = array<i64: 1, 4, 512>}, {pipeline_mode = #tpu.pipeline_mode<synchronous>, transform_indices = @transform_1, window_bounds = array<i64: 9, 512>}, {pipeline_mode = #tpu.pipeline_mode<synchronous>, transform_indices = @transform_2, window_bounds = array<i64: 8, 4>}, {pipeline_mode = #tpu.pipeline_mode<synchronous>, transform_indices = @transform_3, window_bounds = array<i64: 8, 1>}, {pipeline_mode = #tpu.pipeline_mode<synchronous>, transform_indices = @transform_4, window_bounds = array<i64: 8, 9>}, {pipeline_mode = #tpu.pipeline_mode<synchronous>, transform_indices = @transform_5, window_bounds = array<i64: 8, 1>}, {pipeline_mode = #tpu.pipeline_mode<synchronous>, transform_indices = @transform_6, window_bounds = array<i64: 4, 8>}, {pipeline_mode = #tpu.pipeline_mode<synchronous>, transform_indices = @transform_7, window_bounds = array<i64: 4, 1>}, {transform_indices = @transform_8, window_bounds = array<i64: 1, 4, 512>}]} {
    %c0 = arith.constant 0 : index
    %c0_0 = arith.constant 0 : index
    %c0_1 = arith.constant 0 : index
    %0 = vector.load %arg1[%c0, %c0_0, %c0_1] : memref<1x4x512xf32, #tpu.memory_space<vmem>>, vector<1x4x512xf32>
    %1 = vector.shape_cast %0 : vector<1x4x512xf32> to vector<4x512xf32>
    %c0_2 = arith.constant 0 : index
    %c0_3 = arith.constant 0 : index
    %2 = vector.load %arg2[%c0_2, %c0_3] : memref<9x512xf32, #tpu.memory_space<vmem>>, vector<9x512xf32>
    %c0_4 = arith.constant 0 : index
    %c0_5 = arith.constant 0 : index
    %3 = vector.load %arg3[%c0_4, %c0_5] : memref<8x4xf32, #tpu.memory_space<vmem>>, vector<8x4xf32>
    %4 = vector.extract_strided_slice %1 {offsets = [0, 0], sizes = [1, 512], strides = [1, 1]} : vector<4x512xf32> to vector<1x512xf32>
    %5 = vector.extract_strided_slice %3 {offsets = [0, 0], sizes = [8, 1], strides = [1, 1]} : vector<8x4xf32> to vector<8x1xf32>
    %6 = vector.broadcast %4 : vector<1x512xf32> to vector<8x512xf32>
    %7 = vector.broadcast %5 : vector<8x1xf32> to vector<8x512xf32>
    %8 = arith.mulf %6, %7 : vector<8x512xf32>
    %9 = vector.extract_strided_slice %1 {offsets = [1, 0], sizes = [1, 512], strides = [1, 1]} : vector<4x512xf32> to vector<1x512xf32>
    %10 = vector.extract_strided_slice %3 {offsets = [0, 1], sizes = [8, 1], strides = [1, 1]} : vector<8x4xf32> to vector<8x1xf32>
    %11 = vector.broadcast %9 : vector<1x512xf32> to vector<8x512xf32>
    %12 = vector.broadcast %10 : vector<8x1xf32> to vector<8x512xf32>
    %13 = arith.mulf %11, %12 : vector<8x512xf32>
    %14 = vector.extract_strided_slice %1 {offsets = [2, 0], sizes = [1, 512], strides = [1, 1]} : vector<4x512xf32> to vector<1x512xf32>
    %15 = vector.extract_strided_slice %3 {offsets = [0, 2], sizes = [8, 1], strides = [1, 1]} : vector<8x4xf32> to vector<8x1xf32>
    %16 = vector.broadcast %14 : vector<1x512xf32> to vector<8x512xf32>
    %17 = vector.broadcast %15 : vector<8x1xf32> to vector<8x512xf32>
    %18 = arith.mulf %16, %17 : vector<8x512xf32>
    %19 = vector.extract_strided_slice %1 {offsets = [3, 0], sizes = [1, 512], strides = [1, 1]} : vector<4x512xf32> to vector<1x512xf32>
    %20 = vector.extract_strided_slice %3 {offsets = [0, 3], sizes = [8, 1], strides = [1, 1]} : vector<8x4xf32> to vector<8x1xf32>
    %21 = vector.broadcast %19 : vector<1x512xf32> to vector<8x512xf32>
    %22 = vector.broadcast %20 : vector<8x1xf32> to vector<8x512xf32>
    %23 = arith.mulf %21, %22 : vector<8x512xf32>
    %24 = arith.addf %8, %13 : vector<8x512xf32>
    %25 = arith.addf %18, %23 : vector<8x512xf32>
    %26 = arith.addf %24, %25 : vector<8x512xf32>
    %c0_6 = arith.constant 0 : index
    %c0_7 = arith.constant 0 : index
    %27 = vector.load %arg4[%c0_6, %c0_7] : memref<8x1xf32, #tpu.memory_space<vmem>>, vector<8x1xf32>
    %28 = vector.broadcast %27 : vector<8x1xf32> to vector<8x512xf32>
    %29 = arith.addf %26, %28 : vector<8x512xf32>
    %cst = arith.constant 0.000000e+00 : f32
    %cst_8 = arith.constant 6.000000e+00 : f32
    %30 = vector.broadcast %cst : f32 to vector<8x512xf32>
    %31 = arith.maximumf %30, %29 : vector<8x512xf32>
    %32 = vector.broadcast %cst_8 : f32 to vector<8x512xf32>
    %33 = arith.minimumf %32, %31 : vector<8x512xf32>
    %c0_9 = arith.constant 0 : index
    %c0_10 = arith.constant 0 : index
    %34 = vector.load %arg5[%c0_9, %c0_10] : memref<8x9xf32, #tpu.memory_space<vmem>>, vector<8x9xf32>
    %c17_i32 = arith.constant 17 : i32
    %35 = tpu.dynamic_rotate %33 by %c17_i32 dim 1 : vector<8x512xf32>, i32 -> vector<8x512xf32>
    %36 = vector.extract_strided_slice %34 {offsets = [0, 0], sizes = [8, 1], strides = [1, 1]} : vector<8x9xf32> to vector<8x1xf32>
    %37 = vector.broadcast %36 : vector<8x1xf32> to vector<8x512xf32>
    %38 = arith.mulf %35, %37 : vector<8x512xf32>
    %39 = vector.extract_strided_slice %2 {offsets = [0, 0], sizes = [1, 512], strides = [1, 1]} : vector<9x512xf32> to vector<1x512xf32>
    %40 = vector.broadcast %39 : vector<1x512xf32> to vector<8x512xf32>
    %41 = arith.mulf %38, %40 : vector<8x512xf32>
    %c16_i32 = arith.constant 16 : i32
    %42 = tpu.dynamic_rotate %33 by %c16_i32 dim 1 : vector<8x512xf32>, i32 -> vector<8x512xf32>
    %43 = vector.extract_strided_slice %34 {offsets = [0, 1], sizes = [8, 1], strides = [1, 1]} : vector<8x9xf32> to vector<8x1xf32>
    %44 = vector.broadcast %43 : vector<8x1xf32> to vector<8x512xf32>
    %45 = arith.mulf %42, %44 : vector<8x512xf32>
    %46 = vector.extract_strided_slice %2 {offsets = [1, 0], sizes = [1, 512], strides = [1, 1]} : vector<9x512xf32> to vector<1x512xf32>
    %47 = vector.broadcast %46 : vector<1x512xf32> to vector<8x512xf32>
    %48 = arith.mulf %45, %47 : vector<8x512xf32>
    %49 = arith.addf %41, %48 : vector<8x512xf32>
    %c15_i32 = arith.constant 15 : i32
    %50 = tpu.dynamic_rotate %33 by %c15_i32 dim 1 : vector<8x512xf32>, i32 -> vector<8x512xf32>
    %51 = vector.extract_strided_slice %34 {offsets = [0, 2], sizes = [8, 1], strides = [1, 1]} : vector<8x9xf32> to vector<8x1xf32>
    %52 = vector.broadcast %51 : vector<8x1xf32> to vector<8x512xf32>
    %53 = arith.mulf %50, %52 : vector<8x512xf32>
    %54 = vector.extract_strided_slice %2 {offsets = [2, 0], sizes = [1, 512], strides = [1, 1]} : vector<9x512xf32> to vector<1x512xf32>
    %55 = vector.broadcast %54 : vector<1x512xf32> to vector<8x512xf32>
    %56 = arith.mulf %53, %55 : vector<8x512xf32>
    %57 = arith.addf %49, %56 : vector<8x512xf32>
    %c1_i32 = arith.constant 1 : i32
    %58 = tpu.dynamic_rotate %33 by %c1_i32 dim 1 : vector<8x512xf32>, i32 -> vector<8x512xf32>
    %59 = vector.extract_strided_slice %34 {offsets = [0, 3], sizes = [8, 1], strides = [1, 1]} : vector<8x9xf32> to vector<8x1xf32>
    %60 = vector.broadcast %59 : vector<8x1xf32> to vector<8x512xf32>
    %61 = arith.mulf %58, %60 : vector<8x512xf32>
    %62 = vector.extract_strided_slice %2 {offsets = [3, 0], sizes = [1, 512], strides = [1, 1]} : vector<9x512xf32> to vector<1x512xf32>
    %63 = vector.broadcast %62 : vector<1x512xf32> to vector<8x512xf32>
    %64 = arith.mulf %61, %63 : vector<8x512xf32>
    %65 = vector.extract_strided_slice %34 {offsets = [0, 4], sizes = [8, 1], strides = [1, 1]} : vector<8x9xf32> to vector<8x1xf32>
    %66 = vector.broadcast %65 : vector<8x1xf32> to vector<8x512xf32>
    %67 = arith.mulf %33, %66 : vector<8x512xf32>
    %68 = arith.addf %64, %67 : vector<8x512xf32>
    %c511_i32 = arith.constant 511 : i32
    %69 = tpu.dynamic_rotate %33 by %c511_i32 dim 1 : vector<8x512xf32>, i32 -> vector<8x512xf32>
    %70 = vector.extract_strided_slice %34 {offsets = [0, 5], sizes = [8, 1], strides = [1, 1]} : vector<8x9xf32> to vector<8x1xf32>
    %71 = vector.broadcast %70 : vector<8x1xf32> to vector<8x512xf32>
    %72 = arith.mulf %69, %71 : vector<8x512xf32>
    %73 = vector.extract_strided_slice %2 {offsets = [5, 0], sizes = [1, 512], strides = [1, 1]} : vector<9x512xf32> to vector<1x512xf32>
    %74 = vector.broadcast %73 : vector<1x512xf32> to vector<8x512xf32>
    %75 = arith.mulf %72, %74 : vector<8x512xf32>
    %76 = arith.addf %68, %75 : vector<8x512xf32>
    %c497_i32 = arith.constant 497 : i32
    %77 = tpu.dynamic_rotate %33 by %c497_i32 dim 1 : vector<8x512xf32>, i32 -> vector<8x512xf32>
    %78 = vector.extract_strided_slice %34 {offsets = [0, 6], sizes = [8, 1], strides = [1, 1]} : vector<8x9xf32> to vector<8x1xf32>
    %79 = vector.broadcast %78 : vector<8x1xf32> to vector<8x512xf32>
    %80 = arith.mulf %77, %79 : vector<8x512xf32>
    %81 = vector.extract_strided_slice %2 {offsets = [6, 0], sizes = [1, 512], strides = [1, 1]} : vector<9x512xf32> to vector<1x512xf32>
    %82 = vector.broadcast %81 : vector<1x512xf32> to vector<8x512xf32>
    %83 = arith.mulf %80, %82 : vector<8x512xf32>
    %c496_i32 = arith.constant 496 : i32
    %84 = tpu.dynamic_rotate %33 by %c496_i32 dim 1 : vector<8x512xf32>, i32 -> vector<8x512xf32>
    %85 = vector.extract_strided_slice %34 {offsets = [0, 7], sizes = [8, 1], strides = [1, 1]} : vector<8x9xf32> to vector<8x1xf32>
    %86 = vector.broadcast %85 : vector<8x1xf32> to vector<8x512xf32>
    %87 = arith.mulf %84, %86 : vector<8x512xf32>
    %88 = vector.extract_strided_slice %2 {offsets = [7, 0], sizes = [1, 512], strides = [1, 1]} : vector<9x512xf32> to vector<1x512xf32>
    %89 = vector.broadcast %88 : vector<1x512xf32> to vector<8x512xf32>
    %90 = arith.mulf %87, %89 : vector<8x512xf32>
    %91 = arith.addf %83, %90 : vector<8x512xf32>
    %c495_i32 = arith.constant 495 : i32
    %92 = tpu.dynamic_rotate %33 by %c495_i32 dim 1 : vector<8x512xf32>, i32 -> vector<8x512xf32>
    %93 = vector.extract_strided_slice %34 {offsets = [0, 8], sizes = [8, 1], strides = [1, 1]} : vector<8x9xf32> to vector<8x1xf32>
    %94 = vector.broadcast %93 : vector<8x1xf32> to vector<8x512xf32>
    %95 = arith.mulf %92, %94 : vector<8x512xf32>
    %96 = vector.extract_strided_slice %2 {offsets = [8, 0], sizes = [1, 512], strides = [1, 1]} : vector<9x512xf32> to vector<1x512xf32>
    %97 = vector.broadcast %96 : vector<1x512xf32> to vector<8x512xf32>
    %98 = arith.mulf %95, %97 : vector<8x512xf32>
    %99 = arith.addf %91, %98 : vector<8x512xf32>
    %100 = arith.addf %57, %99 : vector<8x512xf32>
    %101 = arith.addf %100, %76 : vector<8x512xf32>
    %c0_11 = arith.constant 0 : index
    %c0_12 = arith.constant 0 : index
    %102 = vector.load %arg6[%c0_11, %c0_12] : memref<8x1xf32, #tpu.memory_space<vmem>>, vector<8x1xf32>
    %103 = vector.broadcast %102 : vector<8x1xf32> to vector<8x512xf32>
    %104 = arith.addf %101, %103 : vector<8x512xf32>
    %cst_13 = arith.constant 0.000000e+00 : f32
    %cst_14 = arith.constant 6.000000e+00 : f32
    %105 = vector.broadcast %cst_13 : f32 to vector<8x512xf32>
    %106 = arith.maximumf %105, %104 : vector<8x512xf32>
    %107 = vector.broadcast %cst_14 : f32 to vector<8x512xf32>
    %108 = arith.minimumf %107, %106 : vector<8x512xf32>
    %c0_15 = arith.constant 0 : index
    %c0_16 = arith.constant 0 : index
    %109 = vector.load %arg7[%c0_15, %c0_16] : memref<4x8xf32, #tpu.memory_space<vmem>>, vector<4x8xf32>
    %110 = vector.extract_strided_slice %108 {offsets = [0, 0], sizes = [1, 512], strides = [1, 1]} : vector<8x512xf32> to vector<1x512xf32>
    %111 = vector.extract_strided_slice %109 {offsets = [0, 0], sizes = [4, 1], strides = [1, 1]} : vector<4x8xf32> to vector<4x1xf32>
    %112 = vector.broadcast %110 : vector<1x512xf32> to vector<4x512xf32>
    %113 = vector.broadcast %111 : vector<4x1xf32> to vector<4x512xf32>
    %114 = arith.mulf %112, %113 : vector<4x512xf32>
    %115 = vector.extract_strided_slice %108 {offsets = [1, 0], sizes = [1, 512], strides = [1, 1]} : vector<8x512xf32> to vector<1x512xf32>
    %116 = vector.extract_strided_slice %109 {offsets = [0, 1], sizes = [4, 1], strides = [1, 1]} : vector<4x8xf32> to vector<4x1xf32>
    %117 = vector.broadcast %115 : vector<1x512xf32> to vector<4x512xf32>
    %118 = vector.broadcast %116 : vector<4x1xf32> to vector<4x512xf32>
    %119 = arith.mulf %117, %118 : vector<4x512xf32>
    %120 = vector.extract_strided_slice %108 {offsets = [2, 0], sizes = [1, 512], strides = [1, 1]} : vector<8x512xf32> to vector<1x512xf32>
    %121 = vector.extract_strided_slice %109 {offsets = [0, 2], sizes = [4, 1], strides = [1, 1]} : vector<4x8xf32> to vector<4x1xf32>
    %122 = vector.broadcast %120 : vector<1x512xf32> to vector<4x512xf32>
    %123 = vector.broadcast %121 : vector<4x1xf32> to vector<4x512xf32>
    %124 = arith.mulf %122, %123 : vector<4x512xf32>
    %125 = vector.extract_strided_slice %108 {offsets = [3, 0], sizes = [1, 512], strides = [1, 1]} : vector<8x512xf32> to vector<1x512xf32>
    %126 = vector.extract_strided_slice %109 {offsets = [0, 3], sizes = [4, 1], strides = [1, 1]} : vector<4x8xf32> to vector<4x1xf32>
    %127 = vector.broadcast %125 : vector<1x512xf32> to vector<4x512xf32>
    %128 = vector.broadcast %126 : vector<4x1xf32> to vector<4x512xf32>
    %129 = arith.mulf %127, %128 : vector<4x512xf32>
    %130 = vector.extract_strided_slice %108 {offsets = [4, 0], sizes = [1, 512], strides = [1, 1]} : vector<8x512xf32> to vector<1x512xf32>
    %131 = vector.extract_strided_slice %109 {offsets = [0, 4], sizes = [4, 1], strides = [1, 1]} : vector<4x8xf32> to vector<4x1xf32>
    %132 = vector.broadcast %130 : vector<1x512xf32> to vector<4x512xf32>
    %133 = vector.broadcast %131 : vector<4x1xf32> to vector<4x512xf32>
    %134 = arith.mulf %132, %133 : vector<4x512xf32>
    %135 = vector.extract_strided_slice %108 {offsets = [5, 0], sizes = [1, 512], strides = [1, 1]} : vector<8x512xf32> to vector<1x512xf32>
    %136 = vector.extract_strided_slice %109 {offsets = [0, 5], sizes = [4, 1], strides = [1, 1]} : vector<4x8xf32> to vector<4x1xf32>
    %137 = vector.broadcast %135 : vector<1x512xf32> to vector<4x512xf32>
    %138 = vector.broadcast %136 : vector<4x1xf32> to vector<4x512xf32>
    %139 = arith.mulf %137, %138 : vector<4x512xf32>
    %140 = vector.extract_strided_slice %108 {offsets = [6, 0], sizes = [1, 512], strides = [1, 1]} : vector<8x512xf32> to vector<1x512xf32>
    %141 = vector.extract_strided_slice %109 {offsets = [0, 6], sizes = [4, 1], strides = [1, 1]} : vector<4x8xf32> to vector<4x1xf32>
    %142 = vector.broadcast %140 : vector<1x512xf32> to vector<4x512xf32>
    %143 = vector.broadcast %141 : vector<4x1xf32> to vector<4x512xf32>
    %144 = arith.mulf %142, %143 : vector<4x512xf32>
    %145 = vector.extract_strided_slice %108 {offsets = [7, 0], sizes = [1, 512], strides = [1, 1]} : vector<8x512xf32> to vector<1x512xf32>
    %146 = vector.extract_strided_slice %109 {offsets = [0, 7], sizes = [4, 1], strides = [1, 1]} : vector<4x8xf32> to vector<4x1xf32>
    %147 = vector.broadcast %145 : vector<1x512xf32> to vector<4x512xf32>
    %148 = vector.broadcast %146 : vector<4x1xf32> to vector<4x512xf32>
    %149 = arith.mulf %147, %148 : vector<4x512xf32>
    %150 = arith.addf %114, %119 : vector<4x512xf32>
    %151 = arith.addf %124, %129 : vector<4x512xf32>
    %152 = arith.addf %134, %139 : vector<4x512xf32>
    %153 = arith.addf %144, %149 : vector<4x512xf32>
    %154 = arith.addf %150, %151 : vector<4x512xf32>
    %155 = arith.addf %152, %153 : vector<4x512xf32>
    %156 = arith.addf %154, %155 : vector<4x512xf32>
    %c0_17 = arith.constant 0 : index
    %c0_18 = arith.constant 0 : index
    %157 = vector.load %arg8[%c0_17, %c0_18] : memref<4x1xf32, #tpu.memory_space<vmem>>, vector<4x1xf32>
    %158 = vector.broadcast %157 : vector<4x1xf32> to vector<4x512xf32>
    %159 = arith.addf %156, %158 : vector<4x512xf32>
    %160 = arith.addf %159, %1 : vector<4x512xf32>
    %c0_19 = arith.constant 0 : index
    %c0_20 = arith.constant 0 : index
    %c0_21 = arith.constant 0 : index
    %161 = vector.load %arg9[%c0_19, %c0_20, %c0_21] : memref<1x4x512xf32, #tpu.memory_space<vmem>>, vector<1x4x512xf32>
    %162 = vector.shape_cast %161 : vector<1x4x512xf32> to vector<4x512xf32>
    %163 = vector.shape_cast %160 : vector<4x512xf32> to vector<1x4x512xf32>
    tpu.vector_store %arg9[%c0_19, %c0_20, %c0_21], %163 {strides = array<i32>} : memref<1x4x512xf32, #tpu.memory_space<vmem>>, vector<1x4x512xf32>,
    return
  }
  func.func @transform_0(%arg0: i32) -> (i32, i32, i32) {
    %c0_i32 = arith.constant 0 : i32
    %c0_i32_0 = arith.constant 0 : i32
    %c0_i32_1 = arith.constant 0 : i32
    return %arg0, %c0_i32, %c0_i32_0 : i32, i32, i32
  }
  func.func @transform_1(%arg0: i32) -> (i32, i32) {
    %c0_i32 = arith.constant 0 : i32
    %c0_i32_0 = arith.constant 0 : i32
    %c0_i32_1 = arith.constant 0 : i32
    return %c0_i32, %c0_i32_0 : i32, i32
  }
  func.func @transform_2(%arg0: i32) -> (i32, i32) {
    %c0_i32 = arith.constant 0 : i32
    %c0_i32_0 = arith.constant 0 : i32
    %c0_i32_1 = arith.constant 0 : i32
    return %c0_i32, %c0_i32_0 : i32, i32
  }
  func.func @transform_3(%arg0: i32) -> (i32, i32) {
    %c0_i32 = arith.constant 0 : i32
    %c0_i32_0 = arith.constant 0 : i32
    %c0_i32_1 = arith.constant 0 : i32
    return %c0_i32, %c0_i32_0 : i32, i32
  }
  func.func @transform_4(%arg0: i32) -> (i32, i32) {
    %c0_i32 = arith.constant 0 : i32
    %c0_i32_0 = arith.constant 0 : i32
    %c0_i32_1 = arith.constant 0 : i32
    return %c0_i32, %c0_i32_0 : i32, i32
  }
  func.func @transform_5(%arg0: i32) -> (i32, i32) {
    %c0_i32 = arith.constant 0 : i32
    %c0_i32_0 = arith.constant 0 : i32
    %c0_i32_1 = arith.constant 0 : i32
    return %c0_i32, %c0_i32_0 : i32, i32
  }
  func.func @transform_6(%arg0: i32) -> (i32, i32) {
    %c0_i32 = arith.constant 0 : i32
    %c0_i32_0 = arith.constant 0 : i32
    %c0_i32_1 = arith.constant 0 : i32
    return %c0_i32, %c0_i32_0 : i32, i32
  }
  func.func @transform_7(%arg0: i32) -> (i32, i32) {
    %c0_i32 = arith.constant 0 : i32
    %c0_i32_0 = arith.constant 0 : i32
    %c0_i32_1 = arith.constant 0 : i32
    return %c0_i32, %c0_i32_0 : i32, i32
  }
  func.func @transform_8(%arg0: i32) -> (i32, i32, i32) {
    %c0_i32 = arith.constant 0 : i32
    %c0_i32_0 = arith.constant 0 : i32
    %c0_i32_1 = arith.constant 0 : i32
    return %arg0, %c0_i32, %c0_i32_0 : i32, i32, i32
  }
}

</mosaic_0001>

<llo_original>
// kernel: tpu_custom_call.1
$region0: #{tpu_custom_call.1}
  #allocation0 [shape = 'u32[]', space=smem, size = 0x4, offset = 0x4, fixed_abs, tag = 'smem constant byte address 0x4 - core index']
  #allocation1 [shape = 'u32[144,128]{1,0:T(1,128)}', space=vmem, size = 0x12000, scoped, tag = 'internal scratch']
  %s0 = inlined_call_operand.vmem [shape: f32[1,4,512], index: 0, kind: input, shape index: {}]
  %s1 = inlined_call_operand.hbm [shape: f32[9,512], index: 1, kind: input, shape index: {}]
  %s2 = inlined_call_operand.vmem [shape: f32[8,4], index: 2, kind: input, shape index: {}]
  %s3 = inlined_call_operand.vmem [shape: f32[8,1], index: 3, kind: input, shape index: {}]
  %s4 = inlined_call_operand.vmem [shape: f32[8,9], index: 4, kind: input, shape index: {}]
  %s5 = inlined_call_operand.vmem [shape: f32[8,1], index: 5, kind: input, shape index: {}]
  %s6 = inlined_call_operand.vmem [shape: f32[4,8], index: 6, kind: input, shape index: {}]
  %s7 = inlined_call_operand.vmem [shape: f32[4,1], index: 7, kind: input, shape index: {}]
  %s8 = inlined_call_operand.hbm [shape: f32[1,4,512], index: 8, kind: output, shape index: {}]
  %s9 = sld [smem:[#allocation0]]
  $region46: #{tpu_custom_call.1} parent=0
    _
  %s11 = ssub.s32 1, %s9
  %s12 = scalar_select 0, %s11, %s9
  $region1: #{tpu_custom_call.1} parent=0
    #allocation2 [shape = 'u8[32768]{0}', space=vmem, size = 0x8000, scoped, tag = 'input window, operand 1, single buffered']
    #allocation3 [shape = 's32[1]{0}', space=sflag, size = 0x4, scoped, tag = 'scoped memory for tpu_custom_call.1']
    #allocation4 [shape = 's32[1]{0}', space=sflag, size = 0x4, scoped, tag = 'scoped memory for tpu_custom_call.1']
    #allocation5 [shape = 'u8[8192]{0}', space=vmem, size = 0x2000, scoped, tag = 'output window, operand 0, single buffered']
    %13 = vsyncpa [#allocation3], 0
    %14 = vsyncpa [#allocation4], 0
    // Predicated region
    $region2: #{tpu_custom_call.1} parent=1 // pred_check
      _
    $region3: #{tpu_custom_call.1} parent=1 // pred_check_branch
      %16 = sbr.rel (0) target = $region5
    $region4: #{tpu_custom_call.1} parent=1 // pred_region
      _
    $region5: #{tpu_custom_call.1} parent=1 // pred_fallthru
      _
    // Predicated region
    $region6: #{tpu_custom_call.1} parent=1 // pred_check
      _
    $region7: #{tpu_custom_call.1} parent=1 // pred_check_branch
      %18 = sbr.rel (0) target = $region9
    $region8: #{tpu_custom_call.1} parent=1 // pred_region
      %s20 = ssub.s32 1024, 1024
      %21 = vsyncadd [#allocation3], %s20
      %s22 = sshll.u32 [#allocation2], 4
      %s23 = int_to_ptr.vmem [resolvable:$true] %s22
      %28 = dma.hbm_to_vmem [thread:$0]  %s1, 1024, %s23, [#allocation3], 512, 512, 32
    $region9: #{tpu_custom_call.1} parent=1 // pred_fallthru
      _
    // Predicated region
    $region10: #{tpu_custom_call.1} parent=1 // pred_check
      _
    $region11: #{tpu_custom_call.1} parent=1 // pred_check_branch
      %30 = sbr.rel (0) target = $region13
    $region12: #{tpu_custom_call.1} parent=1 // pred_region
      _
    $region13: #{tpu_custom_call.1} parent=1 // pred_fallthru
      _
    // Predicated region
    $region14: #{tpu_custom_call.1} parent=1 // pred_check
      _
    $region15: #{tpu_custom_call.1} parent=1 // pred_check_branch
      %32 = sbr.rel (0) target = $region17
    $region16: #{tpu_custom_call.1} parent=1 // pred_region
      _
    $region17: #{tpu_custom_call.1} parent=1 // pred_fallthru
      _
    // Predicated region
    $region18: #{tpu_custom_call.1} parent=1 // pred_check
      _
    $region19: #{tpu_custom_call.1} parent=1 // pred_check_branch
      %34 = sbr.rel (0) target = $region21
    $region20: #{tpu_custom_call.1} parent=1 // pred_region
      _
    $region21: #{tpu_custom_call.1} parent=1 // pred_fallthru
      _
    // Predicated region
    $region22: #{tpu_custom_call.1} parent=1 // pred_check
      _
    $region23: #{tpu_custom_call.1} parent=1 // pred_check_branch
      %36 = sbr.rel (0) target = $region25
    $region24: #{tpu_custom_call.1} parent=1 // pred_region
      _
    $region25: #{tpu_custom_call.1} parent=1 // pred_fallthru
      _
    // Predicated region
    $region26: #{tpu_custom_call.1} parent=1 // pred_check
      _
    $region27: #{tpu_custom_call.1} parent=1 // pred_check_branch
      %38 = sbr.rel (0) target = $region29
    $region28: #{tpu_custom_call.1} parent=1 // pred_region
      _
    $region29: #{tpu_custom_call.1} parent=1 // pred_fallthru
      _
    // Predicated region
    $region30: #{tpu_custom_call.1} parent=1 // pred_check
      _
    $region31: #{tpu_custom_call.1} parent=1 // pred_check_branch
      %40 = sbr.rel (0) target = $region33
    $region32: #{tpu_custom_call.1} parent=1 // pred_region
      _
    $region33: #{tpu_custom_call.1} parent=1 // pred_fallthru
      _
    // Predicated region
    $region34: #{tpu_custom_call.1} parent=1 // pred_check
      _
    $region35: #{tpu_custom_call.1} parent=1 // pred_check_branch
      %42 = sbr.rel (0) target = $region37
    $region36: #{tpu_custom_call.1} parent=1 // pred_region
      %43 = dma.done [#allocation3], 1024
    $region37: #{tpu_custom_call.1} parent=1 // pred_fallthru
      _
    %v44 = vld [vmem:[%s0] sm:$0xff]
    %v45 = vld [vmem:[%s0 + $0x8] sm:$0xff]
    %v46 = vld [vmem:[#allocation2] sm:$0xff]
    %v47 = vld [vmem:[#allocation2 + $0x8] sm:$0xff]
    %v48 = vld [vmem:[#allocation2 + $0x10] sm:$0xff]
    %v49 = vld [vmem:[#allocation2 + $0x18] sm:$0xff]
    %v50 = vld [vmem:[#allocation2 + $0x20] sm:$0x1]
    %v51 = vld [vmem:[#allocation2 + $0x28] sm:$0x1]
    %v52 = vld [vmem:[#allocation2 + $0x30] sm:$0x1]
    %v53 = vld [vmem:[#allocation2 + $0x38] sm:$0x1]
    %v54 = vld [vmem:[%s2] sm:$0xff]
    %v57 = vlaneseq
    %v58 = vshrl.u32 %v57, 7
    %v59 = vsub.s32 0, %v58
    %v60 = vrot.slane %v44, %v59
    %v61 = vlaneseq
    %v62 = vshrl.u32 %v61, 7
    %v63 = vsub.s32 4, %v62
    %v64 = vrot.slane %v44, %v63
    %v65 = vlaneseq
    %v66 = vshrl.u32 %v65, 7
    %v67 = vsub.s32 0, %v66
    %v68 = vrot.slane %v45, %v67
    %v69 = vlaneseq
    %v70 = vshrl.u32 %v69, 7
    %v71 = vsub.s32 4, %v70
    %v72 = vrot.slane %v45, %v71
    %v77 = vlaneseq
    %v78 = vshrl.u32 %v77, 7
    %v79 = vsub.s32 0, %v78
    %v80 = vrot.slane %v60, %v79
    %v81 = vlaneseq
    %v82 = vshrl.u32 %v81, 7
    %v83 = vsub.s32 0, %v82
    %v84 = vrot.slane %v64, %v83
    %v85 = vlaneseq
    %v86 = vshrl.u32 %v85, 7
    %v87 = vsub.s32 0, %v86
    %v88 = vrot.slane %v68, %v87
    %v89 = vlaneseq
    %v90 = vshrl.u32 %v89, 7
    %v91 = vsub.s32 0, %v90
    %v92 = vrot.slane %v72, %v91
    %94 = vset.pattern.permute.xlu0 0
    %95 = vperm.xlu0 %94, %v54
    %v96 = vpop.permute.xlu0 %95
    %v98 = vmul.f32 %v80, %v96
    %v99 = vmul.f32 %v84, %v96
    %v100 = vmul.f32 %v88, %v96
    %v101 = vmul.f32 %v92, %v96
    %v102 = vlaneseq
    %v103 = vshrl.u32 %v102, 7
    %v104 = vsub.s32 1, %v103
    %v105 = vrot.slane %v44, %v104
    %v106 = vlaneseq
    %v107 = vshrl.u32 %v106, 7
    %v108 = vsub.s32 5, %v107
    %v109 = vrot.slane %v44, %v108
    %v110 = vlaneseq
    %v111 = vshrl.u32 %v110, 7
    %v112 = vsub.s32 1, %v111
    %v113 = vrot.slane %v45, %v112
    %v114 = vlaneseq
    %v115 = vshrl.u32 %v114, 7
    %v116 = vsub.s32 5, %v115
    %v117 = vrot.slane %v45, %v116
    %v122 = vlaneseq
    %v123 = vshrl.u32 %v122, 7
    %v124 = vsub.s32 1, %v123
    %v125 = vrot.slane %v105, %v124
    %v126 = vlaneseq
    %v127 = vshrl.u32 %v126, 7
    %v128 = vsub.s32 1, %v127
    %v129 = vrot.slane %v109, %v128
    %v130 = vlaneseq
    %v131 = vshrl.u32 %v130, 7
    %v132 = vsub.s32 1, %v131
    %v133 = vrot.slane %v113, %v132
    %v134 = vlaneseq
    %v135 = vshrl.u32 %v134, 7
    %v136 = vsub.s32 1, %v135
    %v137 = vrot.slane %v117, %v136
    %138 = vset.pattern.permute.xlu0 1
    %139 = vperm.xlu0 %138, %v54
    %v140 = vpop.permute.xlu0 %139
    %v142 = vmul.f32 %v125, %v140
    %v143 = vmul.f32 %v129, %v140
    %v144 = vmul.f32 %v133, %v140
    %v145 = vmul.f32 %v137, %v140
    %v146 = vlaneseq
    %v147 = vshrl.u32 %v146, 7
    %v148 = vsub.s32 2, %v147
    %v149 = vrot.slane %v44, %v148
    %v150 = vlaneseq
    %v151 = vshrl.u32 %v150, 7
    %v152 = vsub.s32 6, %v151
    %v153 = vrot.slane %v44, %v152
    %v154 = vlaneseq
    %v155 = vshrl.u32 %v154, 7
    %v156 = vsub.s32 2, %v155
    %v157 = vrot.slane %v45, %v156
    %v158 = vlaneseq
    %v159 = vshrl.u32 %v158, 7
    %v160 = vsub.s32 6, %v159
    %v161 = vrot.slane %v45, %v160
    %v166 = vlaneseq
    %v167 = vshrl.u32 %v166, 7
    %v168 = vsub.s32 2, %v167
    %v169 = vrot.slane %v149, %v168
    %v170 = vlaneseq
    %v171 = vshrl.u32 %v170, 7
    %v172 = vsub.s32 2, %v171
    %v173 = vrot.slane %v153, %v172
    %v174 = vlaneseq
    %v175 = vshrl.u32 %v174, 7
    %v176 = vsub.s32 2, %v175
    %v177 = vrot.slane %v157, %v176
    %v178 = vlaneseq
    %v179 = vshrl.u32 %v178, 7
    %v180 = vsub.s32 2, %v179
    %v181 = vrot.slane %v161, %v180
    %182 = vset.pattern.permute.xlu0 2
    %183 = vperm.xlu0 %182, %v54
    %v184 = vpop.permute.xlu0 %183
    %v186 = vmul.f32 %v169, %v184
    %v187 = vmul.f32 %v173, %v184
    %v188 = vmul.f32 %v177, %v184
    %v189 = vmul.f32 %v181, %v184
    %v190 = vlaneseq
    %v191 = vshrl.u32 %v190, 7
    %v192 = vsub.s32 3, %v191
    %v193 = vrot.slane %v44, %v192
    %v194 = vlaneseq
    %v195 = vshrl.u32 %v194, 7
    %v196 = vsub.s32 7, %v195
    %v197 = vrot.slane %v44, %v196
    %v198 = vlaneseq
    %v199 = vshrl.u32 %v198, 7
    %v200 = vsub.s32 3, %v199
    %v201 = vrot.slane %v45, %v200
    %v202 = vlaneseq
    %v203 = vshrl.u32 %v202, 7
    %v204 = vsub.s32 7, %v203
    %v205 = vrot.slane %v45, %v204
    %v210 = vlaneseq
    %v211 = vshrl.u32 %v210, 7
    %v212 = vsub.s32 3, %v211
    %v213 = vrot.slane %v193, %v212
    %v214 = vlaneseq
    %v215 = vshrl.u32 %v214, 7
    %v216 = vsub.s32 3, %v215
    %v217 = vrot.slane %v197, %v216
    %v218 = vlaneseq
    %v219 = vshrl.u32 %v218, 7
    %v220 = vsub.s32 3, %v219
    %v221 = vrot.slane %v201, %v220
    %v222 = vlaneseq
    %v223 = vshrl.u32 %v222, 7
    %v224 = vsub.s32 3, %v223
    %v225 = vrot.slane %v205, %v224
    %226 = vset.pattern.permute.xlu0 3
    %227 = vperm.xlu0 %226, %v54
    %v228 = vpop.permute.xlu0 %227
    %v230 = vmul.f32 %v213, %v228
    %v231 = vmul.f32 %v217, %v228
    %v232 = vmul.f32 %v221, %v228
    %v233 = vmul.f32 %v225, %v228
    %v234 = vadd.f32 %v98, %v142
    %v235 = vadd.f32 %v99, %v143
    %v236 = vadd.f32 %v100, %v144
    %v237 = vadd.f32 %v101, %v145
    %v238 = vadd.f32 %v186, %v230
    %v239 = vadd.f32 %v187, %v231
    %v240 = vadd.f32 %v188, %v232
    %v241 = vadd.f32 %v189, %v233
    %v242 = vadd.f32 %v234, %v238
    %v243 = vadd.f32 %v235, %v239
    %v244 = vadd.f32 %v236, %v240
    %v245 = vadd.f32 %v237, %v241
    %v246 = vld [vmem:[%s3] sm:$0xff]
    %248 = vset.pattern.permute.xlu0 0
    %249 = vperm.xlu0 %248, %v246
    %v250 = vpop.permute.xlu0 %249
    %v252 = vadd.f32 %v242, %v250
    %v253 = vadd.f32 %v243, %v250
    %v254 = vadd.f32 %v244, %v250
    %v255 = vadd.f32 %v245, %v250
    %v256 = vmax.f32 %v252, 0.0
    %v257 = vmax.f32 %v253, 0.0
    %v258 = vmax.f32 %v254, 0.0
    %v259 = vmax.f32 %v255, 0.0
    %v260 = vmin.f32 %v256, 6.0
    %v261 = vmin.f32 %v257, 6.0
    %v262 = vmin.f32 %v258, 6.0
    %v263 = vmin.f32 %v259, 6.0
    %v264 = vld [vmem:[%s4] sm:$0xff]
    %265 = vrot.lane.b32.xlu0 %v260, 17
    %v266 = vpop.permute.xlu0 %265
    %267 = vrot.lane.b32.xlu0 %v261, 17
    %v268 = vpop.permute.xlu0 %267
    %269 = vrot.lane.b32.xlu0 %v262, 17
    %v270 = vpop.permute.xlu0 %269
    %271 = vrot.lane.b32.xlu0 %v263, 17
    %v272 = vpop.permute.xlu0 %271
    %v273 = vlaneseq
    %v274 = vand.u32 %v273, 127
    %vm275 = vcmp.lt.s32.totalorder %v274, 17
    %v276 = vsel %vm275, %v270, %v272
    %v277 = vsel %vm275, %v268, %v270
    %v278 = vsel %vm275, %v266, %v268
    %v279 = vsel %vm275, %v272, %v266
    %281 = vset.pattern.permute.xlu0 0
    %282 = vperm.xlu0 %281, %v264
    %v283 = vpop.permute.xlu0 %282
    %v285 = vmul.f32 %v279, %v283
    %v286 = vmul.f32 %v278, %v283
    %v287 = vmul.f32 %v277, %v283
    %v288 = vmul.f32 %v276, %v283
    %v289 = vlaneseq
    %v290 = vshrl.u32 %v289, 7
    %v291 = vsub.s32 0, %v290
    %v292 = vrot.slane %v46, %v291
    %v293 = vlaneseq
    %v294 = vshrl.u32 %v293, 7
    %v295 = vsub.s32 0, %v294
    %v296 = vrot.slane %v47, %v295
    %v297 = vlaneseq
    %v298 = vshrl.u32 %v297, 7
    %v299 = vsub.s32 0, %v298
    %v300 = vrot.slane %v48, %v299
    %v301 = vlaneseq
    %v302 = vshrl.u32 %v301, 7
    %v303 = vsub.s32 0, %v302
    %v304 = vrot.slane %v49, %v303
    %v305 = vmul.f32 %v285, %v292
    %v306 = vmul.f32 %v286, %v296
    %v307 = vmul.f32 %v287, %v300
    %v308 = vmul.f32 %v288, %v304
    %309 = vrot.lane.b32.xlu0 %v260, 16
    %v310 = vpop.permute.xlu0 %309
    %311 = vrot.lane.b32.xlu0 %v261, 16
    %v312 = vpop.permute.xlu0 %311
    %313 = vrot.lane.b32.xlu0 %v262, 16
    %v314 = vpop.permute.xlu0 %313
    %315 = vrot.lane.b32.xlu0 %v263, 16
    %v316 = vpop.permute.xlu0 %315
    %vm317 = vcmp.lt.s32.totalorder %v274, 16
    %v318 = vsel %vm317, %v314, %v316
    %v319 = vsel %vm317, %v312, %v314
    %v320 = vsel %vm317, %v310, %v312
    %v321 = vsel %vm317, %v316, %v310
    %322 = vset.pattern.permute.xlu0 1
    %323 = vperm.xlu0 %322, %v264
    %v324 = vpop.permute.xlu0 %323
    %v326 = vmul.f32 %v321, %v324
    %v327 = vmul.f32 %v320, %v324
    %v328 = vmul.f32 %v319, %v324
    %v329 = vmul.f32 %v318, %v324
    %v330 = vlaneseq
    %v331 = vshrl.u32 %v330, 7
    %v332 = vsub.s32 1, %v331
    %v333 = vrot.slane %v46, %v332
    %v334 = vlaneseq
    %v335 = vshrl.u32 %v334, 7
    %v336 = vsub.s32 1, %v335
    %v337 = vrot.slane %v47, %v336
    %v338 = vlaneseq
    %v339 = vshrl.u32 %v338, 7
    %v340 = vsub.s32 1, %v339
    %v341 = vrot.slane %v48, %v340
    %v342 = vlaneseq
    %v343 = vshrl.u32 %v342, 7
    %v344 = vsub.s32 1, %v343
    %v345 = vrot.slane %v49, %v344
    %v346 = vmul.f32 %v326, %v333
    %v347 = vmul.f32 %v327, %v337
    %v348 = vmul.f32 %v328, %v341
    %v349 = vmul.f32 %v329, %v345
    %v350 = vadd.f32 %v305, %v346
    %v351 = vadd.f32 %v306, %v347
    %v352 = vadd.f32 %v307, %v348
    %v353 = vadd.f32 %v308, %v349
    %354 = vrot.lane.b32.xlu0 %v260, 15
    %v355 = vpop.permute.xlu0 %354
    %356 = vrot.lane.b32.xlu0 %v261, 15
    %v357 = vpop.permute.xlu0 %356
    %358 = vrot.lane.b32.xlu0 %v262, 15
    %v359 = vpop.permute.xlu0 %358
    %360 = vrot.lane.b32.xlu0 %v263, 15
    %v361 = vpop.permute.xlu0 %360
    %vm362 = vcmp.lt.s32.totalorder %v274, 15
    %v363 = vsel %vm362, %v359, %v361
    %v364 = vsel %vm362, %v357, %v359
    %v365 = vsel %vm362, %v355, %v357
    %v366 = vsel %vm362, %v361, %v355
    %367 = vset.pattern.permute.xlu0 2
    %368 = vperm.xlu0 %367, %v264
    %v369 = vpop.permute.xlu0 %368
    %v371 = vmul.f32 %v366, %v369
    %v372 = vmul.f32 %v365, %v369
    %v373 = vmul.f32 %v364, %v369
    %v374 = vmul.f32 %v363, %v369
    %v375 = vlaneseq
    %v376 = vshrl.u32 %v375, 7
    %v377 = vsub.s32 2, %v376
    %v378 = vrot.slane %v46, %v377
    %v379 = vlaneseq
    %v380 = vshrl.u32 %v379, 7
    %v381 = vsub.s32 2, %v380
    %v382 = vrot.slane %v47, %v381
    %v383 = vlaneseq
    %v384 = vshrl.u32 %v383, 7
    %v385 = vsub.s32 2, %v384
    %v386 = vrot.slane %v48, %v385
    %v387 = vlaneseq
    %v388 = vshrl.u32 %v387, 7
    %v389 = vsub.s32 2, %v388
    %v390 = vrot.slane %v49, %v389
    %v391 = vmul.f32 %v371, %v378
    %v392 = vmul.f32 %v372, %v382
    %v393 = vmul.f32 %v373, %v386
    %v394 = vmul.f32 %v374, %v390
    %v395 = vadd.f32 %v350, %v391
    %v396 = vadd.f32 %v351, %v392
    %v397 = vadd.f32 %v352, %v393
    %v398 = vadd.f32 %v353, %v394
    %399 = vrot.lane.b32.xlu0 %v260, 1
    %v400 = vpop.permute.xlu0 %399
    %401 = vrot.lane.b32.xlu0 %v261, 1
    %v402 = vpop.permute.xlu0 %401
    %403 = vrot.lane.b32.xlu0 %v262, 1
    %v404 = vpop.permute.xlu0 %403
    %405 = vrot.lane.b32.xlu0 %v263, 1
    %v406 = vpop.permute.xlu0 %405
    %vm407 = vcmp.lt.s32.totalorder %v274, 1
    %v408 = vsel %vm407, %v404, %v406
    %v409 = vsel %vm407, %v402, %v404
    %v410 = vsel %vm407, %v400, %v402
    %v411 = vsel %vm407, %v406, %v400
    %412 = vset.pattern.permute.xlu0 3
    %413 = vperm.xlu0 %412, %v264
    %v414 = vpop.permute.xlu0 %413
    %v416 = vmul.f32 %v411, %v414
    %v417 = vmul.f32 %v410, %v414
    %v418 = vmul.f32 %v409, %v414
    %v419 = vmul.f32 %v408, %v414
    %v420 = vlaneseq
    %v421 = vshrl.u32 %v420, 7
    %v422 = vsub.s32 3, %v421
    %v423 = vrot.slane %v46, %v422
    %v424 = vlaneseq
    %v425 = vshrl.u32 %v424, 7
    %v426 = vsub.s32 3, %v425
    %v427 = vrot.slane %v47, %v426
    %v428 = vlaneseq
    %v429 = vshrl.u32 %v428, 7
    %v430 = vsub.s32 3, %v429
    %v431 = vrot.slane %v48, %v430
    %v432 = vlaneseq
    %v433 = vshrl.u32 %v432, 7
    %v434 = vsub.s32 3, %v433
    %v435 = vrot.slane %v49, %v434
    %v436 = vmul.f32 %v416, %v423
    %v437 = vmul.f32 %v417, %v427
    %v438 = vmul.f32 %v418, %v431
    %v439 = vmul.f32 %v419, %v435
    %440 = vset.pattern.permute.xlu0 4
    %441 = vperm.xlu0 %440, %v264
    %v442 = vpop.permute.xlu0 %441
    %v444 = vmul.f32 %v260, %v442
    %v445 = vmul.f32 %v261, %v442
    %v446 = vmul.f32 %v262, %v442
    %v447 = vmul.f32 %v263, %v442
    %v448 = vadd.f32 %v436, %v444
    %v449 = vadd.f32 %v437, %v445
    %v450 = vadd.f32 %v438, %v446
    %v451 = vadd.f32 %v439, %v447
    %452 = vrot.lane.b32.xlu0 %v260, 127
    %v453 = vpop.permute.xlu0 %452
    %454 = vrot.lane.b32.xlu0 %v261, 127
    %v455 = vpop.permute.xlu0 %454
    %456 = vrot.lane.b32.xlu0 %v262, 127
    %v457 = vpop.permute.xlu0 %456
    %458 = vrot.lane.b32.xlu0 %v263, 127
    %v459 = vpop.permute.xlu0 %458
    %vm460 = vcmp.lt.s32.totalorder %v274, 127
    %v461 = vsel %vm460, %v457, %v459
    %v462 = vsel %vm460, %v455, %v457
    %v463 = vsel %vm460, %v453, %v455
    %v464 = vsel %vm460, %v459, %v453
    %465 = vset.pattern.permute.xlu0 5
    %466 = vperm.xlu0 %465, %v264
    %v467 = vpop.permute.xlu0 %466
    %v469 = vmul.f32 %v463, %v467
    %v470 = vmul.f32 %v462, %v467
    %v471 = vmul.f32 %v461, %v467
    %v472 = vmul.f32 %v464, %v467
    %v473 = vlaneseq
    %v474 = vshrl.u32 %v473, 7
    %v475 = vsub.s32 5, %v474
    %v476 = vrot.slane %v46, %v475
    %v477 = vlaneseq
    %v478 = vshrl.u32 %v477, 7
    %v479 = vsub.s32 5, %v478
    %v480 = vrot.slane %v47, %v479
    %v481 = vlaneseq
    %v482 = vshrl.u32 %v481, 7
    %v483 = vsub.s32 5, %v482
    %v484 = vrot.slane %v48, %v483
    %v485 = vlaneseq
    %v486 = vshrl.u32 %v485, 7
    %v487 = vsub.s32 5, %v486
    %v488 = vrot.slane %v49, %v487
    %v489 = vmul.f32 %v469, %v476
    %v490 = vmul.f32 %v470, %v480
    %v491 = vmul.f32 %v471, %v484
    %v492 = vmul.f32 %v472, %v488
    %v493 = vadd.f32 %v448, %v489
    %v494 = vadd.f32 %v449, %v490
    %v495 = vadd.f32 %v450, %v491
    %v496 = vadd.f32 %v451, %v492
    %497 = vrot.lane.b32.xlu0 %v260, 113
    %v498 = vpop.permute.xlu0 %497
    %499 = vrot.lane.b32.xlu0 %v261, 113
    %v500 = vpop.permute.xlu0 %499
    %501 = vrot.lane.b32.xlu0 %v262, 113
    %v502 = vpop.permute.xlu0 %501
    %503 = vrot.lane.b32.xlu0 %v263, 113
    %v504 = vpop.permute.xlu0 %503
    %vm505 = vcmp.lt.s32.totalorder %v274, 113
    %v506 = vsel %vm505, %v502, %v504
    %v507 = vsel %vm505, %v500, %v502
    %v508 = vsel %vm505, %v498, %v500
    %v509 = vsel %vm505, %v504, %v498
    %510 = vset.pattern.permute.xlu0 6
    %511 = vperm.xlu0 %510, %v264
    %v512 = vpop.permute.xlu0 %511
    %v514 = vmul.f32 %v508, %v512
    %v515 = vmul.f32 %v507, %v512
    %v516 = vmul.f32 %v506, %v512
    %v517 = vmul.f32 %v509, %v512
    %v518 = vlaneseq
    %v519 = vshrl.u32 %v518, 7
    %v520 = vsub.s32 6, %v519
    %v521 = vrot.slane %v46, %v520
    %v522 = vlaneseq
    %v523 = vshrl.u32 %v522, 7
    %v524 = vsub.s32 6, %v523
    %v525 = vrot.slane %v47, %v524
    %v526 = vlaneseq
    %v527 = vshrl.u32 %v526, 7
    %v528 = vsub.s32 6, %v527
    %v529 = vrot.slane %v48, %v528
    %v530 = vlaneseq
    %v531 = vshrl.u32 %v530, 7
    %v532 = vsub.s32 6, %v531
    %v533 = vrot.slane %v49, %v532
    %v534 = vmul.f32 %v514, %v521
    %v535 = vmul.f32 %v515, %v525
    %v536 = vmul.f32 %v516, %v529
    %v537 = vmul.f32 %v517, %v533
    %538 = vrot.lane.b32.xlu0 %v260, 112
    %v539 = vpop.permute.xlu0 %538
    %540 = vrot.lane.b32.xlu0 %v261, 112
    %v541 = vpop.permute.xlu0 %540
    %542 = vrot.lane.b32.xlu0 %v262, 112
    %v543 = vpop.permute.xlu0 %542
    %544 = vrot.lane.b32.xlu0 %v263, 112
    %v545 = vpop.permute.xlu0 %544
    %vm546 = vcmp.lt.s32.totalorder %v274, 112
    %v547 = vsel %vm546, %v543, %v545
    %v548 = vsel %vm546, %v541, %v543
    %v549 = vsel %vm546, %v539, %v541
    %v550 = vsel %vm546, %v545, %v539
    %551 = vset.pattern.permute.xlu0 7
    %552 = vperm.xlu0 %551, %v264
    %v553 = vpop.permute.xlu0 %552
    %v555 = vmul.f32 %v549, %v553
    %v556 = vmul.f32 %v548, %v553
    %v557 = vmul.f32 %v547, %v553
    %v558 = vmul.f32 %v550, %v553
    %v559 = vlaneseq
    %v560 = vshrl.u32 %v559, 7
    %v561 = vsub.s32 7, %v560
    %v562 = vrot.slane %v46, %v561
    %v563 = vlaneseq
    %v564 = vshrl.u32 %v563, 7
    %v565 = vsub.s32 7, %v564
    %v566 = vrot.slane %v47, %v565
    %v567 = vlaneseq
    %v568 = vshrl.u32 %v567, 7
    %v569 = vsub.s32 7, %v568
    %v570 = vrot.slane %v48, %v569
    %v571 = vlaneseq
    %v572 = vshrl.u32 %v571, 7
    %v573 = vsub.s32 7, %v572
    %v574 = vrot.slane %v49, %v573
    %v575 = vmul.f32 %v555, %v562
    %v576 = vmul.f32 %v556, %v566
    %v577 = vmul.f32 %v557, %v570
    %v578 = vmul.f32 %v558, %v574
    %v579 = vadd.f32 %v534, %v575
    %v580 = vadd.f32 %v535, %v576
    %v581 = vadd.f32 %v536, %v577
    %v582 = vadd.f32 %v537, %v578
    %583 = vrot.lane.b32.xlu0 %v260, 111
    %v584 = vpop.permute.xlu0 %583
    %585 = vrot.lane.b32.xlu0 %v261, 111
    %v586 = vpop.permute.xlu0 %585
    %587 = vrot.lane.b32.xlu0 %v262, 111
    %v588 = vpop.permute.xlu0 %587
    %589 = vrot.lane.b32.xlu0 %v263, 111
    %v590 = vpop.permute.xlu0 %589
    %vm591 = vcmp.lt.s32.totalorder %v274, 111
    %v592 = vsel %vm591, %v588, %v590
    %v593 = vsel %vm591, %v586, %v588
    %v594 = vsel %vm591, %v584, %v586
    %v595 = vsel %vm591, %v590, %v584
    %596 = vset.pattern.permute.xlu0 8
    %597 = vperm.xlu0 %596, %v264
    %v598 = vpop.permute.xlu0 %597
    %v600 = vmul.f32 %v594, %v598
    %v601 = vmul.f32 %v593, %v598
    %v602 = vmul.f32 %v592, %v598
    %v603 = vmul.f32 %v595, %v598
    %v604 = vlaneseq
    %v605 = vshrl.u32 %v604, 7
    %v606 = vsub.s32 0, %v605
    %v607 = vrot.slane %v50, %v606
    %v608 = vlaneseq
    %v609 = vshrl.u32 %v608, 7
    %v610 = vsub.s32 0, %v609
    %v611 = vrot.slane %v51, %v610
    %v612 = vlaneseq
    %v613 = vshrl.u32 %v612, 7
    %v614 = vsub.s32 0, %v613
    %v615 = vrot.slane %v52, %v614
    %v616 = vlaneseq
    %v617 = vshrl.u32 %v616, 7
    %v618 = vsub.s32 0, %v617
    %v619 = vrot.slane %v53, %v618
    %v620 = vmul.f32 %v600, %v607
    %v621 = vmul.f32 %v601, %v611
    %v622 = vmul.f32 %v602, %v615
    %v623 = vmul.f32 %v603, %v619
    %v624 = vadd.f32 %v579, %v620
    %v625 = vadd.f32 %v580, %v621
    %v626 = vadd.f32 %v581, %v622
    %v627 = vadd.f32 %v582, %v623
    %v628 = vadd.f32 %v395, %v624
    %v629 = vadd.f32 %v396, %v625
    %v630 = vadd.f32 %v397, %v626
    %v631 = vadd.f32 %v398, %v627
    %v632 = vadd.f32 %v628, %v493
    %v633 = vadd.f32 %v629, %v494
    %v634 = vadd.f32 %v630, %v495
    %v635 = vadd.f32 %v631, %v496
    %v636 = vld [vmem:[%s5] sm:$0xff]
    %638 = vset.pattern.permute.xlu0 0
    %639 = vperm.xlu0 %638, %v636
    %v640 = vpop.permute.xlu0 %639
    %v642 = vadd.f32 %v632, %v640
    %v643 = vadd.f32 %v633, %v640
    %v644 = vadd.f32 %v634, %v640
    %v645 = vadd.f32 %v635, %v640
    %v646 = vmax.f32 %v642, 0.0
    %v647 = vmax.f32 %v643, 0.0
    %v648 = vmax.f32 %v644, 0.0
    %v649 = vmax.f32 %v645, 0.0
    %v650 = vmin.f32 %v646, 6.0
    %v651 = vmin.f32 %v647, 6.0
    %v652 = vmin.f32 %v648, 6.0
    %v653 = vmin.f32 %v649, 6.0
    %v654 = vld [vmem:[%s6] sm:$0xf]
    %v655 = vlaneseq
    %v656 = vshrl.u32 %v655, 7
    %v657 = vsub.s32 0, %v656
    %v658 = vrot.slane %v650, %v657
    %v659 = vlaneseq
    %v660 = vshrl.u32 %v659, 7
    %v661 = vsub.s32 0, %v660
    %v662 = vrot.slane %v651, %v661
    %v663 = vlaneseq
    %v664 = vshrl.u32 %v663, 7
    %v665 = vsub.s32 0, %v664
    %v666 = vrot.slane %v652, %v665
    %v667 = vlaneseq
    %v668 = vshrl.u32 %v667, 7
    %v669 = vsub.s32 0, %v668
    %v670 = vrot.slane %v653, %v669
    %672 = vset.pattern.permute.xlu0 0
    %673 = vperm.xlu0 %672, %v654
    %v674 = vpop.permute.xlu0 %673
    %v676 = vmul.f32 %v658, %v674
    %v677 = vmul.f32 %v662, %v674
    %v678 = vmul.f32 %v666, %v674
    %v679 = vmul.f32 %v670, %v674
    %v680 = vlaneseq
    %v681 = vshrl.u32 %v680, 7
    %v682 = vsub.s32 1, %v681
    %v683 = vrot.slane %v650, %v682
    %v684 = vlaneseq
    %v685 = vshrl.u32 %v684, 7
    %v686 = vsub.s32 1, %v685
    %v687 = vrot.slane %v651, %v686
    %v688 = vlaneseq
    %v689 = vshrl.u32 %v688, 7
    %v690 = vsub.s32 1, %v689
    %v691 = vrot.slane %v652, %v690
    %v692 = vlaneseq
    %v693 = vshrl.u32 %v692, 7
    %v694 = vsub.s32 1, %v693
    %v695 = vrot.slane %v653, %v694
    %696 = vset.pattern.permute.xlu0 1
    %697 = vperm.xlu0 %696, %v654
    %v698 = vpop.permute.xlu0 %697
    %v700 = vmul.f32 %v683, %v698
    %v701 = vmul.f32 %v687, %v698
    %v702 = vmul.f32 %v691, %v698
    %v703 = vmul.f32 %v695, %v698
    %v704 = vlaneseq
    %v705 = vshrl.u32 %v704, 7
    %v706 = vsub.s32 2, %v705
    %v707 = vrot.slane %v650, %v706
    %v708 = vlaneseq
    %v709 = vshrl.u32 %v708, 7
    %v710 = vsub.s32 2, %v709
    %v711 = vrot.slane %v651, %v710
    %v712 = vlaneseq
    %v713 = vshrl.u32 %v712, 7
    %v714 = vsub.s32 2, %v713
    %v715 = vrot.slane %v652, %v714
    %v716 = vlaneseq
    %v717 = vshrl.u32 %v716, 7
    %v718 = vsub.s32 2, %v717
    %v719 = vrot.slane %v653, %v718
    %720 = vset.pattern.permute.xlu0 2
    %721 = vperm.xlu0 %720, %v654
    %v722 = vpop.permute.xlu0 %721
    %v724 = vmul.f32 %v707, %v722
    %v725 = vmul.f32 %v711, %v722
    %v726 = vmul.f32 %v715, %v722
    %v727 = vmul.f32 %v719, %v722
    %v728 = vlaneseq
    %v729 = vshrl.u32 %v728, 7
    %v730 = vsub.s32 3, %v729
    %v731 = vrot.slane %v650, %v730
    %v732 = vlaneseq
    %v733 = vshrl.u32 %v732, 7
    %v734 = vsub.s32 3, %v733
    %v735 = vrot.slane %v651, %v734
    %v736 = vlaneseq
    %v737 = vshrl.u32 %v736, 7
    %v738 = vsub.s32 3, %v737
    %v739 = vrot.slane %v652, %v738
    %v740 = vlaneseq
    %v741 = vshrl.u32 %v740, 7
    %v742 = vsub.s32 3, %v741
    %v743 = vrot.slane %v653, %v742
    %744 = vset.pattern.permute.xlu0 3
    %745 = vperm.xlu0 %744, %v654
    %v746 = vpop.permute.xlu0 %745
    %v748 = vmul.f32 %v731, %v746
    %v749 = vmul.f32 %v735, %v746
    %v750 = vmul.f32 %v739, %v746
    %v751 = vmul.f32 %v743, %v746
    %v752 = vlaneseq
    %v753 = vshrl.u32 %v752, 7
    %v754 = vsub.s32 4, %v753
    %v755 = vrot.slane %v650, %v754
    %v756 = vlaneseq
    %v757 = vshrl.u32 %v756, 7
    %v758 = vsub.s32 4, %v757
    %v759 = vrot.slane %v651, %v758
    %v760 = vlaneseq
    %v761 = vshrl.u32 %v760, 7
    %v762 = vsub.s32 4, %v761
    %v763 = vrot.slane %v652, %v762
    %v764 = vlaneseq
    %v765 = vshrl.u32 %v764, 7
    %v766 = vsub.s32 4, %v765
    %v767 = vrot.slane %v653, %v766
    %768 = vset.pattern.permute.xlu0 4
    %769 = vperm.xlu0 %768, %v654
    %v770 = vpop.permute.xlu0 %769
    %v772 = vmul.f32 %v755, %v770
    %v773 = vmul.f32 %v759, %v770
    %v774 = vmul.f32 %v763, %v770
    %v775 = vmul.f32 %v767, %v770
    %v776 = vlaneseq
    %v777 = vshrl.u32 %v776, 7
    %v778 = vsub.s32 5, %v777
    %v779 = vrot.slane %v650, %v778
    %v780 = vlaneseq
    %v781 = vshrl.u32 %v780, 7
    %v782 = vsub.s32 5, %v781
    %v783 = vrot.slane %v651, %v782
    %v784 = vlaneseq
    %v785 = vshrl.u32 %v784, 7
    %v786 = vsub.s32 5, %v785
    %v787 = vrot.slane %v652, %v786
    %v788 = vlaneseq
    %v789 = vshrl.u32 %v788, 7
    %v790 = vsub.s32 5, %v789
    %v791 = vrot.slane %v653, %v790
    %792 = vset.pattern.permute.xlu0 5
    %793 = vperm.xlu0 %792, %v654
    %v794 = vpop.permute.xlu0 %793
    %v796 = vmul.f32 %v779, %v794
    %v797 = vmul.f32 %v783, %v794
    %v798 = vmul.f32 %v787, %v794
    %v799 = vmul.f32 %v791, %v794
    %v800 = vlaneseq
    %v801 = vshrl.u32 %v800, 7
    %v802 = vsub.s32 6, %v801
    %v803 = vrot.slane %v650, %v802
    %v804 = vlaneseq
    %v805 = vshrl.u32 %v804, 7
    %v806 = vsub.s32 6, %v805
    %v807 = vrot.slane %v651, %v806
    %v808 = vlaneseq
    %v809 = vshrl.u32 %v808, 7
    %v810 = vsub.s32 6, %v809
    %v811 = vrot.slane %v652, %v810
    %v812 = vlaneseq
    %v813 = vshrl.u32 %v812, 7
    %v814 = vsub.s32 6, %v813
    %v815 = vrot.slane %v653, %v814
    %816 = vset.pattern.permute.xlu0 6
    %817 = vperm.xlu0 %816, %v654
    %v818 = vpop.permute.xlu0 %817
    %v820 = vmul.f32 %v803, %v818
    %v821 = vmul.f32 %v807, %v818
    %v822 = vmul.f32 %v811, %v818
    %v823 = vmul.f32 %v815, %v818
    %v824 = vlaneseq
    %v825 = vshrl.u32 %v824, 7
    %v826 = vsub.s32 7, %v825
    %v827 = vrot.slane %v650, %v826
    %v828 = vlaneseq
    %v829 = vshrl.u32 %v828, 7
    %v830 = vsub.s32 7, %v829
    %v831 = vrot.slane %v651, %v830
    %v832 = vlaneseq
    %v833 = vshrl.u32 %v832, 7
    %v834 = vsub.s32 7, %v833
    %v835 = vrot.slane %v652, %v834
    %v836 = vlaneseq
    %v837 = vshrl.u32 %v836, 7
    %v838 = vsub.s32 7, %v837
    %v839 = vrot.slane %v653, %v838
    %840 = vset.pattern.permute.xlu0 7
    %841 = vperm.xlu0 %840, %v654
    %v842 = vpop.permute.xlu0 %841
    %v844 = vmul.f32 %v827, %v842
    %v845 = vmul.f32 %v831, %v842
    %v846 = vmul.f32 %v835, %v842
    %v847 = vmul.f32 %v839, %v842
    %v848 = vadd.f32 %v676, %v700
    %v849 = vadd.f32 %v677, %v701
    %v850 = vadd.f32 %v678, %v702
    %v851 = vadd.f32 %v679, %v703
    %v852 = vadd.f32 %v724, %v748
    %v853 = vadd.f32 %v725, %v749
    %v854 = vadd.f32 %v726, %v750
    %v855 = vadd.f32 %v727, %v751
    %v856 = vadd.f32 %v772, %v796
    %v857 = vadd.f32 %v773, %v797
    %v858 = vadd.f32 %v774, %v798
    %v859 = vadd.f32 %v775, %v799
    %v860 = vadd.f32 %v820, %v844
    %v861 = vadd.f32 %v821, %v845
    %v862 = vadd.f32 %v822, %v846
    %v863 = vadd.f32 %v823, %v847
    %v864 = vadd.f32 %v848, %v852
    %v865 = vadd.f32 %v849, %v853
    %v866 = vadd.f32 %v850, %v854
    %v867 = vadd.f32 %v851, %v855
    %v868 = vadd.f32 %v856, %v860
    %v869 = vadd.f32 %v857, %v861
    %v870 = vadd.f32 %v858, %v862
    %v871 = vadd.f32 %v859, %v863
    %v872 = vadd.f32 %v864, %v868
    %v873 = vadd.f32 %v865, %v869
    %v874 = vadd.f32 %v866, %v870
    %v875 = vadd.f32 %v867, %v871
    %v876 = vld [vmem:[%s7] sm:$0xf]
    %878 = vset.pattern.permute.xlu0 0
    %879 = vperm.xlu0 %878, %v876
    %v880 = vpop.permute.xlu0 %879
    %v882 = vadd.f32 %v872, %v880
    %v883 = vadd.f32 %v873, %v880
    %v884 = vadd.f32 %v874, %v880
    %v885 = vadd.f32 %v875, %v880
    %v886 = vcombine.high %v44, %v44
    %v887 = vcombine.high %v45, %v45
    %v890 = vadd.f32 %v882, %v44
    %v891 = vadd.f32 %v883, %v886
    %v892 = vadd.f32 %v884, %v45
    %v893 = vadd.f32 %v885, %v887
    %v898 = vcombine.low %v890, %v891
    %v899 = vcombine.low %v892, %v893
    %902 = vst [vmem:[#allocation5] sm:$0xff] %v898
    %903 = vst [vmem:[#allocation5 + $0x8] sm:$0xff] %v899
    // Predicated region
    $region38: #{tpu_custom_call.1} parent=1 // pred_check
      _
    $region39: #{tpu_custom_call.1} parent=1 // pred_check_branch
      %905 = sbr.rel (0) target = $region41
    $region40: #{tpu_custom_call.1} parent=1 // pred_region
      %s907 = ssub.s32 256, 256
      %908 = vsyncadd [#allocation4], %s907
      %s910 = sshll.u32 [#allocation5], 4
      %s911 = int_to_ptr.vmem [resolvable:$true] %s910
      %913 = dma.vmem_to_hbm [thread:$0]  %s911, 256, %s8, [#allocation4]
    $region41: #{tpu_custom_call.1} parent=1 // pred_fallthru
      _
    // Predicated region
    $region42: #{tpu_custom_call.1} parent=1 // pred_check
      _
    $region43: #{tpu_custom_call.1} parent=1 // pred_check_branch
      %915 = sbr.rel (0) target = $region45
    $region44: #{tpu_custom_call.1} parent=1 // pred_region
      %916 = dma.done [#allocation4], 256
    $region45: #{tpu_custom_call.1} parent=1 // pred_fallthru
      _
    %917 = vsyncpa [#allocation3], 1
    %918 = vsyncpa [#allocation4], 1

</llo_original>
